<compile_context>
chip_gen: v6e
topology: v6e:2x2x1
jax: 0.10.0
libtpu: 0.0.40
codegen_flags: <defaults>
</compile_context>

<pallas_src>
import jax
import jax.numpy as jnp
from jax.experimental import pallas as pl
from jax.experimental.pallas import tpu as pltpu


def _wmean_kernel(w_ref, x0_ref, x1_ref, x2_ref, o_ref):
    # w_ref lives in SMEM (scalar prefetch); 3 normalized weights in f32.
    w0 = w_ref[0]
    w1 = w_ref[1]
    w2 = w_ref[2]
    acc = (w0 * x0_ref[...].astype(jnp.float32)
           + w1 * x1_ref[...].astype(jnp.float32)
           + w2 * x2_ref[...].astype(jnp.float32))
    o_ref[...] = acc.astype(o_ref.dtype)


def _pick_tiles(B, D, itemsize, target_block_bytes):
    """Choose (tile_b, tile_d) for a ragged cdiv grid.

    Preference order:
      1. tiny input              -> single whole-array block
      2. tile B, keep D whole    -> contiguous HBM blocks (preferred)
      3. tile D (very wide rows) -> enforce a per-row DMA-chunk floor
    Block shapes always satisfy the (8,128) rule: rows are a multiple of the
    dtype-packed sublane tile (or == B), and the last dim is a multiple of 128
    (or == D).
    """
    # Packed sublane tile: 8 rows f32, 16 rows bf16, 32 rows int8/fp8.
    sublane = max(8, 32 // itemsize)
    total_bytes = B * D * itemsize
    row_bytes = D * itemsize

    # Truly tiny inputs: one block; per-step overhead would dominate and there
    # is nothing meaningful to split across cores.
    if total_bytes <= min(target_block_bytes, 1 << 19):
        return B, D

    # Preferred: tile B only (full-D rows -> each block is contiguous in HBM).
    if sublane * row_bytes <= target_block_bytes and B > sublane:
        tile_b = max(sublane,
                     (target_block_bytes // row_bytes) // sublane * sublane)
        # Force >= 2 blocks along B so the grid spans both v7x TensorCores.
        half_b = (pl.cdiv(B, 2) // sublane) * sublane
        if half_b >= sublane:
            tile_b = min(tile_b, half_b)
        tile_b = min(tile_b, max(sublane, (B // sublane) * sublane))
        return tile_b, D

    # Very wide rows (or B too small to split): tile D with a floor so each
    # per-row DMA chunk stays >= ~2 KiB (512 lanes f32 / 1024 lanes bf16).
    if D >= 128:
        tile_b = B if B <= sublane else sublane
        floor_d = max(128, ((2048 // itemsize) // 128) * 128)
        tile_d = max(floor_d,
                     (target_block_bytes // (tile_b * itemsize)) // 128 * 128)
        tile_d = min(tile_d, D)
        return tile_b, tile_d

    # Only reachable for tiny shapes (small B, D < 128): single block is safe.
    return B, D


def weighted_mean2(inputs, weights, *, target_block_bytes=4 * 1024 * 1024):
    """Pallas implementation of WeightedMean2.forward(inputs)."""
    assert len(inputs) == 3, "WeightedMean2 has 3 learnable weights (n_views=3)"
    x0, x1, x2 = inputs
    B, D = x0.shape
    dtype = x0.dtype
    itemsize = jnp.dtype(dtype).itemsize

    # Glue: normalize the 3 parameters (F.softmax(weights, dim=0)) in f32 so
    # the multiply-accumulate inside the kernel is done in f32.
    w = jax.nn.softmax(weights.astype(jnp.float32), axis=0)

    tile_b, tile_d = _pick_tiles(B, D, itemsize, target_block_bytes)
    grid = (pl.cdiv(B, tile_b), pl.cdiv(D, tile_d))

    # VMEM budget: 4 operands x 2 pipeline buffers x block, plus headroom for
    # in-kernel f32 temporaries. Cap at 48 MiB (safe on v7x's 64 MiB physical
    # VMEM; v5e/v6e have 128 MiB so the cap is never binding there).
    block_bytes = tile_b * tile_d * itemsize
    f32_tmp_bytes = 4 * tile_b * tile_d * 4
    vmem_limit = min(max(2 * 4 * block_bytes + f32_tmp_bytes + (2 << 20),
                         16 << 20),
                     48 << 20)

    # index_map receives (grid_i, grid_j, *scalar_prefetch_refs).
    spec = pl.BlockSpec((tile_b, tile_d), lambda i, j, w_ref: (i, j))

    cost = pl.CostEstimate(
        flops=5 * B * D,                       # 3 mults + 2 adds per element
        transcendentals=0,
        bytes_accessed=4 * B * D * itemsize,   # 3 reads + 1 write
    )

    return pl.pallas_call(
        _wmean_kernel,
        out_shape=jax.ShapeDtypeStruct((B, D), dtype),
        grid_spec=pltpu.PrefetchScalarGridSpec(
            num_scalar_prefetch=1,
            grid=grid,
            in_specs=[spec, spec, spec],
            out_specs=spec,
        ),
        compiler_params=pltpu.CompilerParams(
            dimension_semantics=("parallel", "parallel"),
            vmem_limit_bytes=int(vmem_limit),
        ),
        cost_estimate=cost,
    )(w, x0, x1, x2)


def _ref(inputs, weights):
    w = jax.nn.softmax(weights.astype(jnp.float32), axis=0)
    acc = sum(w[i] * inputs[i].astype(jnp.float32) for i in range(3))
    return acc.astype(inputs[0].dtype)


if __name__ == "__main__":
    key = jax.random.PRNGKey(0)
    k0, k1, k2 = jax.random.split(key, 3)

    # deterministic parameters, matching nn.Parameter(torch.tensor([0.3,0.3,0.4]))
    weights = jnp.array([0.3, 0.3, 0.4], dtype=jnp.float32)

    # --- small case (tiny-input single-block path), f32 ---
    B, D = 8, 256
    x0 = jax.random.normal(k0, (B, D), dtype=jnp.float32)
    x1 = jax.random.normal(k1, (B, D), dtype=jnp.float32)
    x2 = jax.random.normal(k2, (B, D), dtype=jnp.float32)

    out = jax.block_until_ready(weighted_mean2([x0, x1, x2], weights))
    assert out.shape == (B, D)
    assert jnp.allclose(out, _ref([x0, x1, x2], weights), atol=1e-5, rtol=1e-5)

    # --- bf16 case forcing a ragged cdiv grid along B (B=20, tile_b=16) ---
    B2, D2 = 20, 1024
    y0 = jax.random.normal(k0, (B2, D2), dtype=jnp.bfloat16)
    y1 = jax.random.normal(k1, (B2, D2), dtype=jnp.bfloat16)
    y2 = jax.random.normal(k2, (B2, D2), dtype=jnp.bfloat16)

    out2 = jax.block_until_ready(
        weighted_mean2([y0, y1, y2], weights, target_block_bytes=16 * 1024))
    ref2 = _ref([y0, y1, y2], weights)
    assert out2.shape == (B2, D2)
    assert jnp.allclose(out2.astype(jnp.float32), ref2.astype(jnp.float32),
                        atol=2e-2, rtol=2e-2)

    # --- f32 case exercising the contiguous B-tiled multi-block path ---
    B3, D3 = 256, 512
    z0 = jax.random.normal(k0, (B3, D3), dtype=jnp.float32)
    z1 = jax.random.normal(k1, (B3, D3), dtype=jnp.float32)
    z2 = jax.random.normal(k2, (B3, D3), dtype=jnp.float32)

    out3 = jax.block_until_ready(
        weighted_mean2([z0, z1, z2], weights, target_block_bytes=64 * 1024))
    assert out3.shape == (B3, D3)
    assert jnp.allclose(out3, _ref([z0, z1, z2], weights), atol=1e-5, rtol=1e-5)

    print("KERNEL_OK")
</pallas_src>

<mosaic_0001>
module attributes {stable_mosaic.version = 11 : i64} {
  func.func @_wmean_kernel(%arg0: i32, %arg1: i32, %arg2: memref<3xf32, #tpu.memory_space<smem>>, %arg3: memref<8x256xf32, #tpu.memory_space<vmem>>, %arg4: memref<8x256xf32, #tpu.memory_space<vmem>>, %arg5: memref<8x256xf32, #tpu.memory_space<vmem>>, %arg6: memref<8x256xf32, #tpu.memory_space<vmem>>) attributes {dimension_semantics = [#tpu.dimension_semantics<parallel>, #tpu.dimension_semantics<parallel>], iteration_bounds = array<i64: 1, 1>, scalar_prefetch = 1 : i64, scratch_operands = 0 : i64, tpu.core_type = #tpu.core_type<tc>, window_params = [{transform_indices = @transform_0, window_bounds = array<i64: 8, 256>}, {transform_indices = @transform_1, window_bounds = array<i64: 8, 256>}, {transform_indices = @transform_2, window_bounds = array<i64: 8, 256>}, {transform_indices = @transform_3, window_bounds = array<i64: 8, 256>}]} {
    %c0 = arith.constant 0 : index
    %0 = memref.load %arg2[%c0] : memref<3xf32, #tpu.memory_space<smem>>
    %c1 = arith.constant 1 : index
    %1 = memref.load %arg2[%c1] : memref<3xf32, #tpu.memory_space<smem>>
    %c2 = arith.constant 2 : index
    %2 = memref.load %arg2[%c2] : memref<3xf32, #tpu.memory_space<smem>>
    %c0_0 = arith.constant 0 : index
    %c0_1 = arith.constant 0 : index
    %3 = vector.load %arg3[%c0_0, %c0_1] : memref<8x256xf32, #tpu.memory_space<vmem>>, vector<8x256xf32>
    %4 = vector.broadcast %0 : f32 to vector<8x256xf32>
    %5 = arith.mulf %4, %3 : vector<8x256xf32>
    %c0_2 = arith.constant 0 : index
    %c0_3 = arith.constant 0 : index
    %6 = vector.load %arg4[%c0_2, %c0_3] : memref<8x256xf32, #tpu.memory_space<vmem>>, vector<8x256xf32>
    %7 = vector.broadcast %1 : f32 to vector<8x256xf32>
    %8 = arith.mulf %7, %6 : vector<8x256xf32>
    %9 = arith.addf %5, %8 : vector<8x256xf32>
    %c0_4 = arith.constant 0 : index
    %c0_5 = arith.constant 0 : index
    %10 = vector.load %arg5[%c0_4, %c0_5] : memref<8x256xf32, #tpu.memory_space<vmem>>, vector<8x256xf32>
    %11 = vector.broadcast %2 : f32 to vector<8x256xf32>
    %12 = arith.mulf %11, %10 : vector<8x256xf32>
    %13 = arith.addf %9, %12 : vector<8x256xf32>
    %c0_6 = arith.constant 0 : index
    %c0_7 = arith.constant 0 : index
    %14 = vector.load %arg6[%c0_6, %c0_7] : memref<8x256xf32, #tpu.memory_space<vmem>>, vector<8x256xf32>
    tpu.vector_store %arg6[%c0_6, %c0_7], %13 {strides = array<i32>} : memref<8x256xf32, #tpu.memory_space<vmem>>, vector<8x256xf32>,
    return
  }
  func.func @transform_0(%arg0: i32, %arg1: i32, %arg2: memref<3xf32, #tpu.memory_space<smem>>) -> (i32, i32) {
    %c0_i32 = arith.constant 0 : i32
    return %arg0, %arg1 : i32, i32
  }
  func.func @transform_1(%arg0: i32, %arg1: i32, %arg2: memref<3xf32, #tpu.memory_space<smem>>) -> (i32, i32) {
    %c0_i32 = arith.constant 0 : i32
    return %arg0, %arg1 : i32, i32
  }
  func.func @transform_2(%arg0: i32, %arg1: i32, %arg2: memref<3xf32, #tpu.memory_space<smem>>) -> (i32, i32) {
    %c0_i32 = arith.constant 0 : i32
    return %arg0, %arg1 : i32, i32
  }
  func.func @transform_3(%arg0: i32, %arg1: i32, %arg2: memref<3xf32, #tpu.memory_space<smem>>) -> (i32, i32) {
    %c0_i32 = arith.constant 0 : i32
    return %arg0, %arg1 : i32, i32
  }
}

</mosaic_0001>

<llo_original>
// kernel: tpu_custom_call.1
$region0: #{tpu_custom_call.1}
  #allocation0 [shape = 'u32[]', space=smem, size = 0x4, offset = 0x4, fixed_abs, tag = 'smem constant byte address 0x4 - core index']
  #allocation1 [shape = 'u32[144,128]{1,0:T(1,128)}', space=vmem, size = 0x12000, scoped, tag = 'internal scratch']
  #allocation2 [shape = 's32[1]{0}', space=sflag, size = 0x4, scoped, tag = 'scoped memory for tpu_custom_call.1']
  #allocation3 [shape = 'u8[512]{0}', space=smem, size = 0x200, scoped, tag = 'prefetched SMEM operand 0']
  %s0 = inlined_call_operand.hbm [shape: f32[3], index: 0, kind: input, shape index: {}]
  %s1 = inlined_call_operand.hbm [shape: f32[8,256], index: 1, kind: input, shape index: {}]
  %s2 = inlined_call_operand.hbm [shape: f32[8,256], index: 2, kind: input, shape index: {}]
  %s3 = inlined_call_operand.hbm [shape: f32[8,256], index: 3, kind: input, shape index: {}]
  %s4 = inlined_call_operand.hbm [shape: f32[8,256], index: 4, kind: output, shape index: {}]
  %s5 = sld [smem:[#allocation0]]
  $region34: #{tpu_custom_call.1} parent=0
    _
  %s7 = ssub.s32 1, %s5
  %s8 = scalar_select 0, %s7, %s5
  %10 = dma.hbm_to_smem %s0, 16, [#allocation3], [#allocation2]
  %11 = dma.done [#allocation2], 16
  %12 = sfence
  $region1: #{tpu_custom_call.1} parent=0
    #allocation4 [shape = 'u8[8192]{0}', space=vmem, size = 0x2000, scoped, tag = 'input window, operand 1, single buffered']
    #allocation5 [shape = 's32[1]{0}', space=sflag, size = 0x4, scoped, tag = 'scoped memory for tpu_custom_call.1']
    #allocation6 [shape = 's32[1]{0}', space=sflag, size = 0x4, scoped, tag = 'scoped memory for tpu_custom_call.1']
    #allocation7 [shape = 'u8[8192]{0}', space=vmem, size = 0x2000, scoped, tag = 'input window, operand 2, single buffered']
    #allocation8 [shape = 's32[1]{0}', space=sflag, size = 0x4, scoped, tag = 'scoped memory for tpu_custom_call.1']
    #allocation9 [shape = 'u8[8192]{0}', space=vmem, size = 0x2000, scoped, tag = 'input window, operand 3, single buffered']
    #allocation10 [shape = 'u8[8192]{0}', space=vmem, size = 0x2000, scoped, tag = 'output window, operand 0, single buffered']
    %13 = vsyncpa [#allocation5], 0
    %14 = vsyncpa [#allocation8], 0
    %15 = vsyncpa [#allocation6], 0
    // Predicated region
    $region2: #{tpu_custom_call.1} parent=1 // pred_check
      _
    $region3: #{tpu_custom_call.1} parent=1 // pred_check_branch
      %17 = sbr.rel (0) target = $region5
    $region4: #{tpu_custom_call.1} parent=1 // pred_region
      %s19 = ssub.s32 256, 256
      %20 = vsyncadd [#allocation5], %s19
      %s22 = sshll.u32 [#allocation4], 4
      %s23 = int_to_ptr.vmem [resolvable:$true] %s22
      %25 = dma.hbm_to_vmem [thread:$0]  %s1, 256, %s23, [#allocation5]
    $region5: #{tpu_custom_call.1} parent=1 // pred_fallthru
      _
    // Predicated region
    $region6: #{tpu_custom_call.1} parent=1 // pred_check
      _
    $region7: #{tpu_custom_call.1} parent=1 // pred_check_branch
      %27 = sbr.rel (0) target = $region9
    $region8: #{tpu_custom_call.1} parent=1 // pred_region
      %s29 = ssub.s32 256, 256
      %30 = vsyncadd [#allocation8], %s29
      %s32 = sshll.u32 [#allocation7], 4
      %s33 = int_to_ptr.vmem [resolvable:$true] %s32
      %35 = dma.hbm_to_vmem [thread:$0]  %s2, 256, %s33, [#allocation8]
    $region9: #{tpu_custom_call.1} parent=1 // pred_fallthru
      _
    // Predicated region
    $region10: #{tpu_custom_call.1} parent=1 // pred_check
      _
    $region11: #{tpu_custom_call.1} parent=1 // pred_check_branch
      %37 = sbr.rel (0) target = $region13
    $region12: #{tpu_custom_call.1} parent=1 // pred_region
      %s39 = ssub.s32 256, 256
      %40 = vsyncadd [#allocation8], %s39
      %s42 = sshll.u32 [#allocation9], 4
      %s43 = int_to_ptr.vmem [resolvable:$true] %s42
      %45 = dma.hbm_to_vmem [thread:$0]  %s3, 256, %s43, [#allocation8]
    $region13: #{tpu_custom_call.1} parent=1 // pred_fallthru
      _
    // Predicated region
    $region14: #{tpu_custom_call.1} parent=1 // pred_check
      _
    $region15: #{tpu_custom_call.1} parent=1 // pred_check_branch
      %47 = sbr.rel (0) target = $region17
    $region16: #{tpu_custom_call.1} parent=1 // pred_region
      %48 = dma.done [#allocation5], 256
    $region17: #{tpu_custom_call.1} parent=1 // pred_fallthru
      _
    // Predicated region
    $region18: #{tpu_custom_call.1} parent=1 // pred_check
      _
    $region19: #{tpu_custom_call.1} parent=1 // pred_check_branch
      %50 = sbr.rel (0) target = $region21
    $region20: #{tpu_custom_call.1} parent=1 // pred_region
      %51 = dma.done [#allocation8], 256
    $region21: #{tpu_custom_call.1} parent=1 // pred_fallthru
      _
    // Predicated region
    $region22: #{tpu_custom_call.1} parent=1 // pred_check
      _
    $region23: #{tpu_custom_call.1} parent=1 // pred_check_branch
      %53 = sbr.rel (0) target = $region25
    $region24: #{tpu_custom_call.1} parent=1 // pred_region
      %54 = dma.done [#allocation8], 256
    $region25: #{tpu_custom_call.1} parent=1 // pred_fallthru
      _
    %s55 = sld [smem:[#allocation3]]
    %s56 = sld [smem:[#allocation3 + $0x1]]
    %s57 = sld [smem:[#allocation3 + $0x2]]
    %v58 = vld [vmem:[#allocation4] sm:$0xff]
    %v59 = vld [vmem:[#allocation4 + $0x8] sm:$0xff]
    %v60 = vstv %s55
    %v61 = vmul.f32 %v60, %v58
    %v62 = vmul.f32 %v60, %v59
    %v63 = vld [vmem:[#allocation7] sm:$0xff]
    %v64 = vld [vmem:[#allocation7 + $0x8] sm:$0xff]
    %v65 = vstv %s56
    %v66 = vmul.f32 %v65, %v63
    %v67 = vmul.f32 %v65, %v64
    %v68 = vadd.f32 %v61, %v66
    %v69 = vadd.f32 %v62, %v67
    %v70 = vld [vmem:[#allocation9] sm:$0xff]
    %v71 = vld [vmem:[#allocation9 + $0x8] sm:$0xff]
    %v72 = vstv %s57
    %v73 = vmul.f32 %v72, %v70
    %v74 = vmul.f32 %v72, %v71
    %v75 = vadd.f32 %v68, %v73
    %v76 = vadd.f32 %v69, %v74
    %77 = vst [vmem:[#allocation10] sm:$0xff] %v75
    %78 = vst [vmem:[#allocation10 + $0x8] sm:$0xff] %v76
    // Predicated region
    $region26: #{tpu_custom_call.1} parent=1 // pred_check
      _
    $region27: #{tpu_custom_call.1} parent=1 // pred_check_branch
      %80 = sbr.rel (0) target = $region29
    $region28: #{tpu_custom_call.1} parent=1 // pred_region
      %s82 = ssub.s32 256, 256
      %83 = vsyncadd [#allocation6], %s82
      %s85 = sshll.u32 [#allocation10], 4
      %s86 = int_to_ptr.vmem [resolvable:$true] %s85
      %88 = dma.vmem_to_hbm [thread:$0]  %s86, 256, %s4, [#allocation6]
    $region29: #{tpu_custom_call.1} parent=1 // pred_fallthru
      _
    // Predicated region
    $region30: #{tpu_custom_call.1} parent=1 // pred_check
      _
    $region31: #{tpu_custom_call.1} parent=1 // pred_check_branch
      %90 = sbr.rel (0) target = $region33
    $region32: #{tpu_custom_call.1} parent=1 // pred_region
      %91 = dma.done [#allocation6], 256
    $region33: #{tpu_custom_call.1} parent=1 // pred_fallthru
      _
    %92 = vsyncpa [#allocation5], 1
    %93 = vsyncpa [#allocation8], 1
    %94 = vsyncpa [#allocation6], 1

</llo_original>
